<compile_context>
chip_gen: v7x
topology: tpu7x:2x2x1
jax: 0.10.0
libtpu: 0.0.40
codegen_flags: <defaults>
</compile_context>

<pallas_src>
import functools
import math

import jax
import jax.numpy as jnp
from jax.experimental import pallas as pl
from jax.experimental.pallas import tpu as pltpu

_LANE = 128
_SUBLANE = 8
_MAX_PACK = 32            # max feature slots fused when a lane-aligned divisor exists
_MAX_PACK_FULL_AXIS = 64  # max feature slots when taking the whole feature axis
_MAX_BLOCK_B = 2048
_VMEM_SLACK = 1 << 20


# --------------------------------------------------------------------------- #
# Small helpers
# --------------------------------------------------------------------------- #
def _round_up(v, m):
    return -(-v // m) * m


def _vmem_block_bytes(shape, dtype):
    """Bytes of a VMEM block with (8, 128) padding on the last two dims."""
    dims = list(shape)
    if len(dims) >= 1:
        dims[-1] = _round_up(dims[-1], _LANE)
    if len(dims) >= 2:
        dims[-2] = _round_up(dims[-2], _SUBLANE)
    size = 1
    for d in dims:
        size *= int(d)
    return size * jnp.dtype(dtype).itemsize


def _vmem_capacity_bytes():
    """Per-TensorCore VMEM capacity; conservative default if the query fails."""
    try:
        info = pltpu.get_tpu_info()
        cap = int(getattr(info, "vmem_capacity_bytes", 0))
        if cap > 0:
            return cap
    except Exception:
        pass
    return 64 << 20  # v7x per-core size: safe lower bound for every generation


def _choose_block_b(batch, row_bytes, fixed_bytes, budget_bytes,
                    max_block_b=_MAX_BLOCK_B):
    """Largest batch tile (multiple of 8, or the full batch) fitting the budget."""
    if batch <= _SUBLANE:
        return int(batch)
    avail = max(budget_bytes - fixed_bytes, row_bytes * _SUBLANE)
    tb = min(avail // max(row_bytes, 1), max_block_b, batch)
    if tb >= batch:
        return int(batch)
    return int(max((tb // _SUBLANE) * _SUBLANE, _SUBLANE))


def _choose_packed_block_n(n, d_in, d_out, compute_dtype, budget_bytes):
    """Feature-group size TN s.t. TN | n and TN*d_in, TN*d_out are lane multiples
    (or TN == n, which uses the full-dim escape of the BlockSpec lane rule)."""
    g_in = _LANE // math.gcd(d_in, _LANE)
    g_out = _LANE // math.gcd(d_out, _LANE)
    tn0 = g_in * g_out // math.gcd(g_in, g_out)

    def scratch_ok(tn):
        return (_vmem_block_bytes((tn * d_in, tn * d_out), compute_dtype)
                <= budget_bytes // 2)

    if tn0 <= _MAX_PACK and n % tn0 == 0 and scratch_ok(tn0):
        tn, m = tn0, 2
        while (tn0 * m <= _MAX_PACK and n % (tn0 * m) == 0
               and tn0 * m * d_in <= 256 and tn0 * m * d_out <= 256
               and scratch_ok(tn0 * m)):
            tn = tn0 * m
            m += 1
        return tn
    if n <= _MAX_PACK_FULL_AXIS and scratch_ok(n):
        return n
    return None


def _valid_packed_block_n(n, d_in, d_out, tn):
    if tn is None or tn <= 0 or n % tn != 0 or tn > _MAX_PACK_FULL_AXIS:
        return False
    lane_in_ok = (tn * d_in) % _LANE == 0 or tn == n
    lane_out_ok = (tn * d_out) % _LANE == 0 or tn == n
    return lane_in_ok and lane_out_ok


# --------------------------------------------------------------------------- #
# Kernels
# --------------------------------------------------------------------------- #
def _nlinear_packed_kernel(x_ref, w_ref, b_ref, o_ref, wbd_ref):
    """Packed path.

    x_ref:   (TB, TN*d_in)        input dtype (dense lanes)
    w_ref:   (TN, d_in, d_out)    weight dtype
    b_ref:   (1, TN*d_out)        bias dtype
    o_ref:   (TB, TN*d_out)       output dtype
    wbd_ref: (TN*d_in, TN*d_out)  VMEM scratch, compute dtype (block-diag weight)
    """
    tn, d_in, d_out = w_ref.shape

    # Build the block-diagonal weight tile once per n-block (inner batch index
    # == 0); it stays resident across all batch tiles of this n-block.
    @pl.when(pl.program_id(1) == 0)
    def _build_block_diag():
        wbd_ref[...] = jnp.zeros_like(wbd_ref)
        for t in range(tn):  # bounded static unroll (<= _MAX_PACK_FULL_AXIS)
            wbd_ref[pl.ds(t * d_in, d_in), pl.ds(t * d_out, d_out)] = (
                w_ref[t].astype(wbd_ref.dtype))

    x = x_ref[...].astype(wbd_ref.dtype)            # in-kernel cast (VPU, hidden)
    y = jnp.dot(x, wbd_ref[...], preferred_element_type=jnp.float32)
    y = y + b_ref[...].astype(jnp.float32)          # single bias add, bcast over TB
    o_ref[...] = y.astype(o_ref.dtype)              # single dense store


def _nlinear_per_feature_kernel(x_ref, w_ref, b_ref, o_ref, *, compute_dtype):
    """Fallback path: one feature slot per grid step (squeezed n dim).

    x_ref: (TB, d_in); w_ref: (d_in, d_out); b_ref: (1, d_out); o_ref: (TB, d_out)
    """
    x = x_ref[...].astype(compute_dtype)
    w = w_ref[...].astype(compute_dtype)
    y = jnp.dot(x, w, preferred_element_type=jnp.float32)
    y = y + b_ref[...].astype(jnp.float32)
    o_ref[...] = y.astype(o_ref.dtype)


# --------------------------------------------------------------------------- #
# pallas_call wrappers
# --------------------------------------------------------------------------- #
def _nlinear_packed_call(x, weight, bias, out_dtype, compute_dtype, block_n,
                         block_b, budget_bytes, vmem_limit_bytes, cost):
    B, n, d_in = x.shape
    d_out = weight.shape[-1]
    tn = int(block_n)

    x_it = jnp.dtype(x.dtype).itemsize
    o_it = jnp.dtype(out_dtype).itemsize
    row_bytes = 2 * (_round_up(tn * d_in, _LANE) * x_it
                     + _round_up(tn * d_out, _LANE) * o_it)
    fixed = (2 * (_vmem_block_bytes((tn, d_in, d_out), weight.dtype)
                  + _vmem_block_bytes((1, tn * d_out), bias.dtype))
             + _vmem_block_bytes((tn * d_in, tn * d_out), compute_dtype)
             + _VMEM_SLACK)
    tb = (int(block_b) if block_b is not None
          else _choose_block_b(B, row_bytes, fixed, budget_bytes))
    tb = min(tb, B)
    if tb < B:
        tb = max((tb // _SUBLANE) * _SUBLANE, _SUBLANE)

    grid = (n // tn, pl.cdiv(B, tb))

    out2 = pl.pallas_call(
        _nlinear_packed_kernel,
        out_shape=jax.ShapeDtypeStruct((B, n * d_out), out_dtype),
        grid=grid,
        in_specs=[
            pl.BlockSpec((tb, tn * d_in), lambda i, j: (j, i)),
            pl.BlockSpec((tn, d_in, d_out), lambda i, j: (i, 0, 0)),
            pl.BlockSpec((1, tn * d_out), lambda i, j: (0, i)),
        ],
        out_specs=pl.BlockSpec((tb, tn * d_out), lambda i, j: (j, i)),
        scratch_shapes=[pltpu.VMEM((tn * d_in, tn * d_out), compute_dtype)],
        compiler_params=pltpu.CompilerParams(
            # n axis parallel (megacore); B axis must stay "arbitrary" so the
            # once-per-n-block scratch build (pl.when on the B index) is valid.
            dimension_semantics=("parallel", "arbitrary"),
            vmem_limit_bytes=int(vmem_limit_bytes)),
        cost_estimate=cost,
    )(x.reshape(B, n * d_in), weight, bias.reshape(1, n * d_out))
    return out2.reshape(B, n, d_out)


def _nlinear_per_feature_call(x, weight, bias, out_dtype, compute_dtype,
                              block_b, budget_bytes, vmem_limit_bytes, cost):
    B, n, d_in = x.shape
    d_out = weight.shape[-1]
    x_it = jnp.dtype(x.dtype).itemsize
    o_it = jnp.dtype(out_dtype).itemsize
    row_bytes = 2 * (_round_up(d_in, _LANE) * x_it + _round_up(d_out, _LANE) * o_it)
    fixed = (2 * (_vmem_block_bytes((d_in, d_out), weight.dtype)
                  + _vmem_block_bytes((1, d_out), bias.dtype))
             + _VMEM_SLACK)
    tb = (int(block_b) if block_b is not None
          else _choose_block_b(B, row_bytes, fixed, budget_bytes))
    tb = min(tb, B)
    if tb < B:
        tb = max((tb // _SUBLANE) * _SUBLANE, _SUBLANE)

    grid = (n, pl.cdiv(B, tb))

    out = pl.pallas_call(
        functools.partial(_nlinear_per_feature_kernel, compute_dtype=compute_dtype),
        out_shape=jax.ShapeDtypeStruct((B, n, d_out), out_dtype),
        grid=grid,
        in_specs=[
            pl.BlockSpec((tb, None, d_in), lambda i, j: (j, i, 0)),
            pl.BlockSpec((None, d_in, d_out), lambda i, j: (i, 0, 0)),
            pl.BlockSpec((None, 1, d_out), lambda i, j: (i, 0, 0)),
        ],
        out_specs=pl.BlockSpec((tb, None, d_out), lambda i, j: (j, i, 0)),
        compiler_params=pltpu.CompilerParams(
            dimension_semantics=("parallel", "parallel"),
            vmem_limit_bytes=int(vmem_limit_bytes)),
        cost_estimate=cost,
    )(x, weight, bias.reshape(n, 1, d_out))
    return out


def nlinear_forward(x, weight, bias, *, compute_dtype=None, mode="auto",
                    block_b=None, block_n=None):
    """x: (B, n, d_in); weight: (n, d_in, d_out); bias: (n, d_out) -> (B, n, d_out)."""
    assert x.ndim == 3 and weight.ndim == 3 and bias.ndim == 2
    B, n, d_in = x.shape
    n_w, d_in_w, d_out = weight.shape
    assert (n, d_in) == (n_w, d_in_w), "x / weight shape mismatch"
    assert bias.shape == (n, d_out), "bias shape mismatch"
    if mode not in ("auto", "packed", "per_feature"):
        raise ValueError(f"unknown mode: {mode!r}")

    # Numerics match the PyTorch module by default (no silent bf16 downcast);
    # a narrower compute dtype is strictly opt-in and applied in-kernel.
    out_dtype = jnp.promote_types(jnp.promote_types(x.dtype, weight.dtype), bias.dtype)
    cdt = jnp.dtype(compute_dtype) if compute_dtype is not None else jnp.dtype(out_dtype)

    cap = _vmem_capacity_bytes()
    budget = min(cap // 3, 48 << 20)                    # double-buffered working set
    vmem_limit = min(int(cap * 0.80), 100 << 20)        # generation-aware scoped VMEM

    cost = pl.CostEstimate(
        flops=2 * B * n * d_in * d_out,
        transcendentals=0,
        bytes_accessed=int(x.size * jnp.dtype(x.dtype).itemsize
                           + weight.size * jnp.dtype(weight.dtype).itemsize
                           + bias.size * jnp.dtype(bias.dtype).itemsize
                           + B * n * d_out * jnp.dtype(out_dtype).itemsize))

    tn_packed = (int(block_n) if block_n is not None
                 else _choose_packed_block_n(n, d_in, d_out, cdt, budget))
    packed_ok = _valid_packed_block_n(n, d_in, d_out, tn_packed)
    if mode == "packed" and not packed_ok:
        raise ValueError("packed mode requires block_n | n with lane-aligned "
                         "block_n*in_features and block_n*out_features "
                         "(or block_n == n with a VMEM-sized feature axis)")

    if mode == "packed" or (mode == "auto" and packed_ok):
        return _nlinear_packed_call(x, weight, bias, out_dtype, cdt, tn_packed,
                                    block_b, budget, vmem_limit, cost)
    return _nlinear_per_feature_call(x, weight, bias, out_dtype, cdt,
                                     block_b, budget, vmem_limit, cost)


# --------------------------------------------------------------------------- #
# Reference / init (match _NLinear.reset_parameters)
# --------------------------------------------------------------------------- #
def nlinear_reference(x, weight, bias):
    return (jnp.einsum("bni,nio->bno", x, weight,
                       precision=jax.lax.Precision.HIGHEST)
            + bias[None, :, :])


def init_nlinear_params(key, n, in_features, out_features, dtype=jnp.float32):
    d_in_rsqrt = in_features ** (-0.5)
    k_w, k_b = jax.random.split(key)
    weight = jax.random.uniform(k_w, (n, in_features, out_features), dtype=dtype,
                                minval=-d_in_rsqrt, maxval=d_in_rsqrt)
    bias = jax.random.uniform(k_b, (n, out_features), dtype=dtype,
                              minval=-d_in_rsqrt, maxval=d_in_rsqrt)
    return weight, bias


if __name__ == "__main__":
    key = jax.random.PRNGKey(0)
    k1, k2, k3, k4, k5, k6 = jax.random.split(key, 6)

    # Case 1: module-scale small shapes -> packed path (whole feature axis).
    B, n, d_in, d_out = 8, 4, 16, 32
    x = jax.random.normal(k1, (B, n, d_in), dtype=jnp.float32)
    w, b = init_nlinear_params(k2, n, d_in, d_out)
    y = jax.block_until_ready(nlinear_forward(x, w, b))
    y_ref = nlinear_reference(x, w, b)
    assert y.shape == (B, n, d_out) and y.dtype == jnp.float32
    assert jnp.allclose(y, y_ref, atol=1e-3, rtol=1e-3)

    # Case 2: packed path with a real 2-D grid (2 n-blocks x 2 batch tiles),
    # exercising the weight-stationary block-diagonal scratch reuse.
    B2, n2, di2, do2 = 256, 32, 16, 24
    x2 = jax.random.normal(k3, (B2, n2, di2), dtype=jnp.float32)
    w2, b2 = init_nlinear_params(k4, n2, di2, do2)
    y2 = jax.block_until_ready(nlinear_forward(x2, w2, b2, block_b=128))
    y2_ref = nlinear_reference(x2, w2, b2)
    assert jnp.allclose(y2, y2_ref, atol=1e-3, rtol=1e-3)

    # Case 2b: opt-in bf16 compute (cast in-kernel, f32 accumulation).
    y2b = jax.block_until_ready(
        nlinear_forward(x2, w2, b2, block_b=128, compute_dtype=jnp.bfloat16))
    assert jnp.allclose(y2b, y2_ref, atol=3e-2, rtol=3e-2)

    # Case 3: force the per-feature fallback (shapes with no lane-aligned
    # feature grouping would take this path automatically).
    B3, n3, di3, do3 = 64, 16, 24, 40
    x3 = jax.random.normal(k5, (B3, n3, di3), dtype=jnp.float32)
    w3, b3 = init_nlinear_params(k6, n3, di3, do3)
    y3 = jax.block_until_ready(nlinear_forward(x3, w3, b3, mode="per_feature"))
    y3_ref = nlinear_reference(x3, w3, b3)
    assert jnp.allclose(y3, y3_ref, atol=1e-3, rtol=1e-3)

    print("KERNEL_OK")
</pallas_src>

<mosaic_0001>
module attributes {stable_mosaic.version = 11 : i64} {
  func.func @_nlinear_packed_kernel(%arg0: i32, %arg1: i32, %arg2: memref<8x64xf32, #tpu.memory_space<vmem>>, %arg3: memref<4x16x32xf32, #tpu.memory_space<vmem>>, %arg4: memref<1x128xf32, #tpu.memory_space<vmem>>, %arg5: memref<8x128xf32, #tpu.memory_space<vmem>>, %arg6: memref<64x128xf32, #tpu.memory_space<vmem>>) attributes {dimension_semantics = [#tpu.dimension_semantics<parallel>, #tpu.dimension_semantics<arbitrary>], iteration_bounds = array<i64: 1, 1>, scalar_prefetch = 0 : i64, scratch_operands = 1 : i64, tpu.core_type = #tpu.core_type<tc>, window_params = [{transform_indices = @transform_0, window_bounds = array<i64: 8, 64>}, {transform_indices = @transform_1, window_bounds = array<i64: 4, 16, 32>}, {transform_indices = @transform_2, window_bounds = array<i64: 1, 128>}, {transform_indices = @transform_3, window_bounds = array<i64: 8, 128>}]} {
    %c0_i32 = arith.constant 0 : i32
    %0 = arith.cmpi eq, %arg1, %c0_i32 : i32
    %1 = arith.extui %0 : i1 to i32
    %c0_i32_0 = arith.constant 0 : i32
    %2 = arith.cmpi ne, %1, %c0_i32_0 : i32
    scf.if %2 {
      %cst_8 = arith.constant 0.000000e+00 : f32
      %10 = vector.broadcast %cst_8 : f32 to vector<64x128xf32>
      %c0_9 = arith.constant 0 : index
      %c0_10 = arith.constant 0 : index
      %11 = vector.load %arg6[%c0_9, %c0_10] : memref<64x128xf32, #tpu.memory_space<vmem>>, vector<64x128xf32>
      tpu.vector_store %arg6[%c0_9, %c0_10], %10 {strides = array<i32>} : memref<64x128xf32, #tpu.memory_space<vmem>>, vector<64x128xf32>,
      %c0_11 = arith.constant 0 : index
      %c0_12 = arith.constant 0 : index
      %c0_13 = arith.constant 0 : index
      %12 = vector.load %arg3[%c0_11, %c0_12, %c0_13] : memref<4x16x32xf32, #tpu.memory_space<vmem>>, vector<1x16x32xf32>
      %13 = vector.shape_cast %12 : vector<1x16x32xf32> to vector<16x32xf32>
      %c0_14 = arith.constant 0 : index
      %c0_15 = arith.constant 0 : index
      %14 = vector.load %arg6[%c0_14, %c0_15] : memref<64x128xf32, #tpu.memory_space<vmem>>, vector<16x32xf32>
      tpu.vector_store %arg6[%c0_14, %c0_15], %13 {strides = array<i32>} : memref<64x128xf32, #tpu.memory_space<vmem>>, vector<16x32xf32>,
      %c1 = arith.constant 1 : index
      %c0_16 = arith.constant 0 : index
      %c0_17 = arith.constant 0 : index
      %15 = vector.load %arg3[%c1, %c0_16, %c0_17] : memref<4x16x32xf32, #tpu.memory_space<vmem>>, vector<1x16x32xf32>
      %16 = vector.shape_cast %15 : vector<1x16x32xf32> to vector<16x32xf32>
      %c16 = arith.constant 16 : index
      %c32 = arith.constant 32 : index
      %17 = vector.load %arg6[%c16, %c32] : memref<64x128xf32, #tpu.memory_space<vmem>>, vector<16x32xf32>
      tpu.vector_store %arg6[%c16, %c32], %16 {strides = array<i32>} : memref<64x128xf32, #tpu.memory_space<vmem>>, vector<16x32xf32>,
      %c2 = arith.constant 2 : index
      %c0_18 = arith.constant 0 : index
      %c0_19 = arith.constant 0 : index
      %18 = vector.load %arg3[%c2, %c0_18, %c0_19] : memref<4x16x32xf32, #tpu.memory_space<vmem>>, vector<1x16x32xf32>
      %19 = vector.shape_cast %18 : vector<1x16x32xf32> to vector<16x32xf32>
      %c32_20 = arith.constant 32 : index
      %c64 = arith.constant 64 : index
      %20 = vector.load %arg6[%c32_20, %c64] : memref<64x128xf32, #tpu.memory_space<vmem>>, vector<16x32xf32>
      tpu.vector_store %arg6[%c32_20, %c64], %19 {strides = array<i32>} : memref<64x128xf32, #tpu.memory_space<vmem>>, vector<16x32xf32>,
      %c3 = arith.constant 3 : index
      %c0_21 = arith.constant 0 : index
      %c0_22 = arith.constant 0 : index
      %21 = vector.load %arg3[%c3, %c0_21, %c0_22] : memref<4x16x32xf32, #tpu.memory_space<vmem>>, vector<1x16x32xf32>
      %22 = vector.shape_cast %21 : vector<1x16x32xf32> to vector<16x32xf32>
      %c48 = arith.constant 48 : index
      %c96 = arith.constant 96 : index
      %23 = vector.load %arg6[%c48, %c96] : memref<64x128xf32, #tpu.memory_space<vmem>>, vector<16x32xf32>
      tpu.vector_store %arg6[%c48, %c96], %22 {strides = array<i32>} : memref<64x128xf32, #tpu.memory_space<vmem>>, vector<16x32xf32>,
    } else {
    }
    %c0 = arith.constant 0 : index
    %c0_1 = arith.constant 0 : index
    %3 = vector.load %arg2[%c0, %c0_1] : memref<8x64xf32, #tpu.memory_space<vmem>>, vector<8x64xf32>
    %c0_2 = arith.constant 0 : index
    %c0_3 = arith.constant 0 : index
    %4 = vector.load %arg6[%c0_2, %c0_3] : memref<64x128xf32, #tpu.memory_space<vmem>>, vector<64x128xf32>
    %cst = arith.constant dense<0.000000e+00> : vector<8x128xf32>
    %5 = tpu.matmul %3, %4, %cst {dimension_numbers = #tpu.dot_dimension_numbers<[1], [0], [0], [1], [0, 0, 1, 1], [], []>} : vector<8x64xf32>, vector<64x128xf32>, vector<8x128xf32> -> vector<8x128xf32>
    %c0_4 = arith.constant 0 : index
    %c0_5 = arith.constant 0 : index
    %6 = vector.load %arg4[%c0_4, %c0_5] : memref<1x128xf32, #tpu.memory_space<vmem>>, vector<1x128xf32>
    %7 = vector.broadcast %6 : vector<1x128xf32> to vector<8x128xf32>
    %8 = arith.addf %5, %7 : vector<8x128xf32>
    %c0_6 = arith.constant 0 : index
    %c0_7 = arith.constant 0 : index
    %9 = vector.load %arg5[%c0_6, %c0_7] : memref<8x128xf32, #tpu.memory_space<vmem>>, vector<8x128xf32>
    tpu.vector_store %arg5[%c0_6, %c0_7], %8 {strides = array<i32>} : memref<8x128xf32, #tpu.memory_space<vmem>>, vector<8x128xf32>,
    return
  }
  func.func @transform_0(%arg0: i32, %arg1: i32) -> (i32, i32) {
    %c0_i32 = arith.constant 0 : i32
    return %arg1, %arg0 : i32, i32
  }
  func.func @transform_1(%arg0: i32, %arg1: i32) -> (i32, i32, i32) {
    %c0_i32 = arith.constant 0 : i32
    %c0_i32_0 = arith.constant 0 : i32
    %c0_i32_1 = arith.constant 0 : i32
    return %arg0, %c0_i32, %c0_i32_0 : i32, i32, i32
  }
  func.func @transform_2(%arg0: i32, %arg1: i32) -> (i32, i32) {
    %c0_i32 = arith.constant 0 : i32
    %c0_i32_0 = arith.constant 0 : i32
    return %c0_i32, %arg0 : i32, i32
  }
  func.func @transform_3(%arg0: i32, %arg1: i32) -> (i32, i32) {
    %c0_i32 = arith.constant 0 : i32
    return %arg1, %arg0 : i32, i32
  }
}

</mosaic_0001>

<llo_original>
// kernel: tpu_custom_call.1
$region0: #{tpu_custom_call.1}
  #allocation0 [shape = 'u32[]', space=smem, size = 0x4, offset = 0x4, fixed_abs, tag = 'smem constant byte address 0x4 - core index']
  #allocation1 [shape = 'u32[144,128]{1,0:T(1,128)}', space=vmem, size = 0x12000, scoped, tag = 'internal scratch']
  #allocation2 [shape = 'f32[64,128]{1,0:T(8,128)}', space=vmem, size = 0x8000, scoped, tag = 'scratch operand']
  %s0 = inlined_call_operand.hbm [shape: f32[8,64], index: 0, kind: input, shape index: {}]
  %s1 = inlined_call_operand.hbm [shape: f32[4,16,32], index: 1, kind: input, shape index: {}]
  %s2 = inlined_call_operand.vmem [shape: f32[1,128], index: 2, kind: input, shape index: {}]
  %s3 = inlined_call_operand.hbm [shape: f32[8,128], index: 3, kind: output, shape index: {}]
  %s4 = sld [smem:[#allocation0]]
  $region34: #{tpu_custom_call.1} parent=0
    _
  %s6 = ssub.s32 1, %s4
  %s7 = scalar_select 0, %s6, %s4
  $region1: #{tpu_custom_call.1} parent=0
    #allocation3 [shape = 'u8[4096]{0}', space=vmem, size = 0x1000, scoped, tag = 'input window, operand 0, single buffered']
    #allocation4 [shape = 's32[1]{0}', space=sflag, size = 0x4, scoped, tag = 'scoped memory for tpu_custom_call.1']
    #allocation5 [shape = 's32[1]{0}', space=sflag, size = 0x4, scoped, tag = 'scoped memory for tpu_custom_call.1']
    #allocation6 [shape = 'u8[32768]{0}', space=vmem, size = 0x8000, scoped, tag = 'input window, operand 1, single buffered']
    #allocation7 [shape = 's32[1]{0}', space=sflag, size = 0x4, scoped, tag = 'scoped memory for tpu_custom_call.1']
    #allocation8 [shape = 'u8[4096]{0}', space=vmem, size = 0x1000, scoped, tag = 'output window, operand 0, single buffered']
    %8 = vsyncpa [#allocation4], 0
    %9 = vsyncpa [#allocation7], 0
    %10 = vsyncpa [#allocation5], 0
    // Predicated region
    $region2: #{tpu_custom_call.1} parent=1 // pred_check
      _
    $region3: #{tpu_custom_call.1} parent=1 // pred_check_branch
      %12 = sbr.rel (0) target = $region5
    $region4: #{tpu_custom_call.1} parent=1 // pred_region
      %s14 = ssub.s32 128, 128
      %15 = vsyncadd [#allocation4], %s14
      %s17 = sshll.u32 [#allocation3], 4
      %s18 = int_to_ptr.vmem [resolvable:$true] %s17
      %20 = dma.hbm_to_vmem [thread:$0]  %s0, 128, %s18, [#allocation4]
    $region5: #{tpu_custom_call.1} parent=1 // pred_fallthru
      _
    // Predicated region
    $region6: #{tpu_custom_call.1} parent=1 // pred_check
      _
    $region7: #{tpu_custom_call.1} parent=1 // pred_check_branch
      %22 = sbr.rel (0) target = $region9
    $region8: #{tpu_custom_call.1} parent=1 // pred_region
      %s24 = ssub.s32 1024, 1024
      %25 = vsyncadd [#allocation7], %s24
      %s26 = sshll.u32 [#allocation6], 4
      %s27 = int_to_ptr.vmem [resolvable:$true] %s26
      %32 = dma.hbm_to_vmem [thread:$0]  %s1, 1024, %s27, [#allocation7], 128, 128, 8
    $region9: #{tpu_custom_call.1} parent=1 // pred_fallthru
      _
    // Predicated region
    $region10: #{tpu_custom_call.1} parent=1 // pred_check
      _
    $region11: #{tpu_custom_call.1} parent=1 // pred_check_branch
      %34 = sbr.rel (0) target = $region13
    $region12: #{tpu_custom_call.1} parent=1 // pred_region
      _
    $region13: #{tpu_custom_call.1} parent=1 // pred_fallthru
      _
    // Predicated region
    $region14: #{tpu_custom_call.1} parent=1 // pred_check
      _
    $region15: #{tpu_custom_call.1} parent=1 // pred_check_branch
      %36 = sbr.rel (0) target = $region17
    $region16: #{tpu_custom_call.1} parent=1 // pred_region
      %37 = dma.done [#allocation4], 128
    $region17: #{tpu_custom_call.1} parent=1 // pred_fallthru
      _
    // Predicated region
    $region18: #{tpu_custom_call.1} parent=1 // pred_check
      _
    $region19: #{tpu_custom_call.1} parent=1 // pred_check_branch
      %39 = sbr.rel (0) target = $region21
    $region20: #{tpu_custom_call.1} parent=1 // pred_region
      %40 = dma.done [#allocation7], 1024
    $region21: #{tpu_custom_call.1} parent=1 // pred_fallthru
      _
    %p41 = scmp.eq.s32.totalorder 0, 0
    // Predicated region
    $region22: #{tpu_custom_call.1} parent=1 // pred_check
      %p42 = pneg %p41
    $region23: #{tpu_custom_call.1} parent=1 // pred_check_branch
      %44 = sbr.rel (%p42) target = $region25
    $region24: #{tpu_custom_call.1} parent=1 // pred_region
      %45 = vst [vmem:[#allocation2] sm:$0xff] 0.0
      %46 = vst [vmem:[#allocation2 + $0x8] sm:$0xff] 0.0
      %47 = vst [vmem:[#allocation2 + $0x10] sm:$0xff] 0.0
      %48 = vst [vmem:[#allocation2 + $0x18] sm:$0xff] 0.0
      %49 = vst [vmem:[#allocation2 + $0x20] sm:$0xff] 0.0
      %50 = vst [vmem:[#allocation2 + $0x28] sm:$0xff] 0.0
      %51 = vst [vmem:[#allocation2 + $0x30] sm:$0xff] 0.0
      %52 = vst [vmem:[#allocation2 + $0x38] sm:$0xff] 0.0
      %v53 = vld [vmem:[#allocation6] sm:$0xff]
      %v54 = vld [vmem:[#allocation6 + $0x8] sm:$0xff]
      %vm55 = vcmask 261120
      %56 = vst.msk [vmem:[#allocation2] sm:$0xff] %vm55, %v53
      %57 = vst.msk [vmem:[#allocation2 + $0x8] sm:$0xff] %vm55, %v54
      %s58 = scalar_lea.vmem [#allocation6], 16
      %v59 = vld [vmem:[%s58] sm:$0xff]
      %v60 = vld [vmem:[%s58 + $0x8] sm:$0xff]
      %63 = vrot.lane.b32.xlu0 %v59, 32
      %v64 = vpop.permute.xlu0 %63
      %65 = vrot.lane.b32.xlu0 %v60, 32
      %v66 = vpop.permute.xlu0 %65
      %vm69 = vcmask 523520
      %70 = vst.msk [vmem:[#allocation2 + $0x10] sm:$0xff] %vm69, %v64
      %71 = vst.msk [vmem:[#allocation2 + $0x18] sm:$0xff] %vm69, %v66
      %s72 = scalar_lea.vmem [#allocation6], 32
      %v73 = vld [vmem:[%s72] sm:$0xff]
      %v74 = vld [vmem:[%s72 + $0x8] sm:$0xff]
      %77 = vrot.lane.b32.xlu0 %v73, 64
      %v78 = vpop.permute.xlu0 %77
      %79 = vrot.lane.b32.xlu0 %v74, 64
      %v80 = vpop.permute.xlu0 %79
      %vm83 = vcmask 785920
      %84 = vst.msk [vmem:[#allocation2 + $0x20] sm:$0xff] %vm83, %v78
      %85 = vst.msk [vmem:[#allocation2 + $0x28] sm:$0xff] %vm83, %v80
      %s86 = scalar_lea.vmem [#allocation6], 48
      %v87 = vld [vmem:[%s86] sm:$0xff]
      %v88 = vld [vmem:[%s86 + $0x8] sm:$0xff]
      %91 = vrot.lane.b32.xlu0 %v87, 96
      %v92 = vpop.permute.xlu0 %91
      %93 = vrot.lane.b32.xlu0 %v88, 96
      %v94 = vpop.permute.xlu0 %93
      %vm97 = vcmask 1048320
      %98 = vst.msk [vmem:[#allocation2 + $0x30] sm:$0xff] %vm97, %v92
      %99 = vst.msk [vmem:[#allocation2 + $0x38] sm:$0xff] %vm97, %v94
    $region25: #{tpu_custom_call.1} parent=1 // pred_fallthru
      _
    %v100 = vld [vmem:[#allocation3] sm:$0xff]
    %v101 = vld [vmem:[#allocation2] sm:$0xff]
    %v102 = vld [vmem:[#allocation2 + $0x8] sm:$0xff]
    %v103 = vld [vmem:[#allocation2 + $0x10] sm:$0xff]
    %v104 = vld [vmem:[#allocation2 + $0x18] sm:$0xff]
    %v105 = vld [vmem:[#allocation2 + $0x20] sm:$0xff]
    %v106 = vld [vmem:[#allocation2 + $0x28] sm:$0xff]
    %v107 = vld [vmem:[#allocation2 + $0x30] sm:$0xff]
    %v108 = vld [vmem:[#allocation2 + $0x38] sm:$0xff]
    %v109 = vld [vmem:[%s2] sm:$0x1]
    %v111 = vlaneseq
    %v112 = vshrl.u32 %v111, 7
    %v113 = vsub.s32 0, %v112
    %v114 = vrot.slane %v109, %v113
    %vm116 = vcmask 523264
    %v118 = vsel %vm116, %v100, 0
    %120 = vmatprep.subr.mxu0 0.0
    %121 = vmatpush1.msra.mxu0 %v101
    %122 = vmatprep.subr.mxu0 0.0
    %123 = vmatpush1.msra.mxu0 %v102
    %124 = vmatprep.subr.mxu0 0.0
    %125 = vmatpush1.msra.mxu0 %v103
    %126 = vmatprep.subr.mxu0 0.0
    %127 = vmatpush1.msra.mxu0 %v104
    %128 = vmatprep.subr.mxu0 0.0
    %129 = vmatpush1.msra.mxu0 %v105
    %130 = vmatprep.subr.mxu0 0.0
    %131 = vmatpush1.msra.mxu0 %v106
    %132 = vmatprep.subr.mxu0 0.0
    %133 = vmatpush1.msra.mxu0 %v107
    %134 = vmatprep.subr.mxu0 0.0
    %135 = vmatpush1.msra.mxu0 %v108
    %136 = vmatprep.subr.mxu0 0.0
    %137 = vmatpush1.msra.mxu0 0.0
    %138 = vmatprep.subr.mxu0 0.0
    %139 = vmatpush1.msra.mxu0 0.0
    %140 = vmatprep.subr.mxu0 0.0
    %141 = vmatpush1.msra.mxu0 0.0
    %142 = vmatprep.subr.mxu0 0.0
    %143 = vmatpush1.msra.mxu0 0.0
    %144 = vmatprep.subr.mxu0 0.0
    %145 = vmatpush1.msra.mxu0 0.0
    %146 = vmatprep.subr.mxu0 0.0
    %147 = vmatpush1.msra.mxu0 0.0
    %148 = vmatprep.subr.mxu0 0.0
    %149 = vmatpush1.msra.mxu0 0.0
    %150 = vmatprep.subr.mxu0 0.0
    %151 = vmatpush1.msra.mxu0 0.0
    %152 = vmatprep.subr.mxu0 0.0
    %153 = vmatpush1.msra.mxu0 0.0
    %154 = vmatprep.subr.mxu0 0.0
    %155 = vmatpush1.msra.mxu0 0.0
    %156 = vmatprep.subr.mxu0 0.0
    %157 = vmatpush1.msra.mxu0 0.0
    %158 = vmatprep.subr.mxu0 0.0
    %159 = vmatpush1.msra.mxu0 0.0
    %160 = vmatprep.subr.mxu0 0.0
    %161 = vmatpush1.msra.mxu0 0.0
    %162 = vmatprep.subr.mxu0 0.0
    %163 = vmatpush1.msra.mxu0 0.0
    %164 = vmatprep.subr.mxu0 0.0
    %165 = vmatpush1.msra.mxu0 0.0
    %166 = vmatprep.subr.mxu0 0.0
    %167 = vmatpush1.msra.mxu0 0.0
    %168 = vmatprep.subr.mxu0 0.0
    %169 = vmatpush1.msra.mxu0 0.0
    %170 = vmatprep.subr.mxu0 0.0
    %171 = vmatpush1.msra.mxu0 0.0
    %172 = vmatprep.subr.mxu0 0.0
    %173 = vmatpush1.msra.mxu0 0.0
    %174 = vmatprep.subr.mxu0 0.0
    %175 = vmatpush1.msra.mxu0 0.0
    %176 = vmatprep.subr.mxu0 0.0
    %177 = vmatpush1.msra.mxu0 0.0
    %178 = vmatprep.subr.mxu0 0.0
    %179 = vmatpush1.msra.mxu0 0.0
    %180 = vmatprep.subr.mxu0 0.0
    %181 = vmatpush1.msra.mxu0 0.0
    %182 = vmatprep.subr.mxu0 0.0
    %183 = vmatpush1.msra.mxu0 0.0
    %184 = vmatprep.mubr.f32.mxu0 0.0
    %185 = vmatmul.mubr.f32.gmra.mrb[0].mxu0 %v118
    %v186 = vpop.f32.mrb[0].mxu0
    %v187 = vadd.f32 %v114, %v186
    %v188 = vpop.f32.mrb[0].mxu0
    %189 = vdwg.mxu0
    %190 = vst [vmem:[#allocation8] sm:$0xff] %v187
    // Predicated region
    $region26: #{tpu_custom_call.1} parent=1 // pred_check
      _
    $region27: #{tpu_custom_call.1} parent=1 // pred_check_branch
      %192 = sbr.rel (0) target = $region29
    $region28: #{tpu_custom_call.1} parent=1 // pred_region
      %s194 = ssub.s32 128, 128
      %195 = vsyncadd [#allocation5], %s194
      %s197 = sshll.u32 [#allocation8], 4
      %s198 = int_to_ptr.vmem [resolvable:$true] %s197
      %200 = dma.vmem_to_hbm [thread:$0]  %s198, 128, %s3, [#allocation5]
    $region29: #{tpu_custom_call.1} parent=1 // pred_fallthru
      _
    // Predicated region
    $region30: #{tpu_custom_call.1} parent=1 // pred_check
      _
    $region31: #{tpu_custom_call.1} parent=1 // pred_check_branch
      %202 = sbr.rel (0) target = $region33
    $region32: #{tpu_custom_call.1} parent=1 // pred_region
      %203 = dma.done [#allocation5], 128
    $region33: #{tpu_custom_call.1} parent=1 // pred_fallthru
      _
    %204 = vsyncpa [#allocation4], 1
    %205 = vsyncpa [#allocation7], 1
    %206 = vsyncpa [#allocation5], 1

</llo_original>
